<compile_context>
chip_gen: v7x
topology: tpu7x:2x2x1
jax: 0.10.0
libtpu: 0.0.40
codegen_flags: <defaults>
</compile_context>

<pallas_src>
import math
import functools

import jax
import jax.numpy as jnp
import numpy as np
from jax.experimental import pallas as pl
from jax.experimental.pallas import tpu as pltpu


def _pick_tile(m, candidates=(1024, 512, 256, 128, 64, 32, 16, 8)):
    """Largest candidate tile that evenly divides m (falls back to full m)."""
    for t in candidates:
        if m % t == 0:
            return t
    return m


# ----------------------------- Pallas kernels -----------------------------

def _linear_kernel(x_ref, w_ref, b_ref, o_ref):
    # o = x @ w + b.  Operands stay in their native dtype (bf16 inputs would
    # take the fast MXU path); accumulation is f32 via preferred_element_type.
    acc = jnp.dot(x_ref[...], w_ref[...], preferred_element_type=jnp.float32)
    o_ref[...] = (acc + b_ref[...].astype(jnp.float32)).astype(o_ref.dtype)


def linear(x, w, b):
    """x:(M,K) @ w:(K,N) + b:(N,), tiled over M.  K and N are C / 2C for this
    module (small), so they stay whole per block and no K-accumulator is needed."""
    M, K = x.shape
    Kw, N = w.shape
    assert K == Kw
    tm = _pick_tile(M)
    cost = pl.CostEstimate(
        flops=2 * M * K * N,
        transcendentals=0,
        bytes_accessed=(M * K + K * N + N + M * N) * x.dtype.itemsize)
    return pl.pallas_call(
        _linear_kernel,
        out_shape=jax.ShapeDtypeStruct((M, N), x.dtype),
        grid=(M // tm,),
        in_specs=[
            pl.BlockSpec((tm, K), lambda i: (i, 0)),
            pl.BlockSpec((K, N), lambda i: (0, 0)),
            pl.BlockSpec((1, N), lambda i: (0, 0)),
        ],
        out_specs=pl.BlockSpec((tm, N), lambda i: (i, 0)),
        compiler_params=pltpu.CompilerParams(dimension_semantics=("parallel",)),
        cost_estimate=cost,
    )(x, w, b.reshape(1, N))


def _linear_ln_kernel(x_ref, w_ref, b_ref, g_ref, bb_ref, o_ref, *, eps):
    # Fused conv-as-matmul + LayerNorm epilogue (LN math kept in f32).
    acc = jnp.dot(x_ref[...], w_ref[...], preferred_element_type=jnp.float32)
    acc = acc + b_ref[...].astype(jnp.float32)
    mean = jnp.mean(acc, axis=-1, keepdims=True)
    var = jnp.mean((acc - mean) ** 2, axis=-1, keepdims=True)
    y = (acc - mean) * jax.lax.rsqrt(var + eps)
    o_ref[...] = (y * g_ref[...].astype(jnp.float32)
                  + bb_ref[...].astype(jnp.float32)).astype(o_ref.dtype)


def linear_layernorm(x, w, b, gamma, beta, eps=1e-5):
    M, K = x.shape
    N = w.shape[1]
    tm = _pick_tile(M)
    cost = pl.CostEstimate(
        flops=2 * M * K * N + 8 * M * N,
        transcendentals=M,
        bytes_accessed=(M * K + K * N + 3 * N + M * N) * x.dtype.itemsize)
    kern = functools.partial(_linear_ln_kernel, eps=eps)
    return pl.pallas_call(
        kern,
        out_shape=jax.ShapeDtypeStruct((M, N), x.dtype),
        grid=(M // tm,),
        in_specs=[
            pl.BlockSpec((tm, K), lambda i: (i, 0)),
            pl.BlockSpec((K, N), lambda i: (0, 0)),
            pl.BlockSpec((1, N), lambda i: (0, 0)),
            pl.BlockSpec((1, N), lambda i: (0, 0)),
            pl.BlockSpec((1, N), lambda i: (0, 0)),
        ],
        out_specs=pl.BlockSpec((tm, N), lambda i: (i, 0)),
        compiler_params=pltpu.CompilerParams(dimension_semantics=("parallel",)),
        cost_estimate=cost,
    )(x, w, b.reshape(1, N), gamma.reshape(1, N), beta.reshape(1, N))


def _attn_kernel(q_ref, kv_ref, o_ref, *, num_heads, head_dim, scale):
    C = num_heads * head_dim
    q = q_ref[0]                                            # (tq, C)
    # Pre-scale q once (tq*C elements) instead of scaling the (tq, Nkv) scores.
    q = q * jnp.asarray(scale, q.dtype)
    kv = kv_ref[0]                                          # (Nkv, 2C)
    outs = []
    for h in range(num_heads):
        lo = h * head_dim
        hi = lo + head_dim
        qh = q[:, lo:hi]                                    # (tq, hd)
        kh = kv[:, lo:hi]                                   # (Nkv, hd)
        vh = kv[:, C + lo:C + hi]                           # (Nkv, hd)
        # QK^T without an explicit k transpose: contract the head_dim axes.
        s = jax.lax.dot_general(qh, kh, (((1,), (1,)), ((), ())),
                                preferred_element_type=jnp.float32)  # (tq, Nkv)
        m = jnp.max(s, axis=-1, keepdims=True)
        p = jnp.exp(s - m)                                  # softmax math in f32
        l = jnp.sum(p, axis=-1, keepdims=True)
        inv = pl.reciprocal(l, approx=True)                 # EUP, not a VALU divide
        oh = jnp.dot(p.astype(vh.dtype), vh,
                     preferred_element_type=jnp.float32)    # (tq, hd)
        outs.append(oh * inv)
    # Single lane-dense store: all heads packed so the last dim is C, not hd.
    o_ref[0] = jnp.concatenate(outs, axis=-1).astype(o_ref.dtype)


def attention_core(q, kv, num_heads, scale):
    """q:(B,N,C)  kv:(B,Nkv,2C) -> (B,N,C).

    Heads are split inside the kernel via static column windows (k head h is
    cols [h*hd,(h+1)*hd) of kv, v head h is cols [C+h*hd, C+(h+1)*hd)), so no
    JAX-level head transposes are materialized and the output stays lane-dense.
    The query dim is tiled so the live f32 score tile is (tq, Nkv)."""
    B, N, C = q.shape
    Nkv = kv.shape[1]
    hd = C // num_heads
    tq = _pick_tile(N, candidates=(512, 256, 128, 64, 32, 16, 8))
    cost = pl.CostEstimate(
        flops=4 * B * num_heads * N * Nkv * hd + 3 * B * num_heads * N * Nkv,
        transcendentals=B * num_heads * N * (Nkv + 1),
        bytes_accessed=(2 * B * N * C + 2 * B * Nkv * C) * q.dtype.itemsize)
    kern = functools.partial(_attn_kernel, num_heads=num_heads,
                             head_dim=hd, scale=scale)
    return pl.pallas_call(
        kern,
        out_shape=jax.ShapeDtypeStruct((B, N, C), q.dtype),
        grid=(B, N // tq),
        in_specs=[
            pl.BlockSpec((1, tq, C), lambda b, i: (b, i, 0)),
            pl.BlockSpec((1, Nkv, 2 * C), lambda b, i: (b, 0, 0)),
        ],
        out_specs=pl.BlockSpec((1, tq, C), lambda b, i: (b, i, 0)),
        compiler_params=pltpu.CompilerParams(
            dimension_semantics=("parallel", "parallel")),
        cost_estimate=cost,
    )(q, kv)


# ----------------------------- parameter init -----------------------------

def init_params(key, dim, sr_ratio, qkv_bias=False):
    ks = jax.random.split(key, 4)

    def trunc_normal(k, shape, std=0.02):
        # PyTorch trunc_normal_: truncated at +/- 2 std around mean 0.
        return std * jax.random.truncated_normal(k, -2.0, 2.0, shape, jnp.float32)

    p = {
        # Linear weights stored in PyTorch (out, in) layout.
        "q_w": trunc_normal(ks[0], (dim, dim)),
        "q_b": jnp.zeros((dim,), jnp.float32),       # qkv_bias=False -> zero == no bias
        "kv_w": trunc_normal(ks[1], (2 * dim, dim)),
        "kv_b": jnp.zeros((2 * dim,), jnp.float32),
        "proj_w": trunc_normal(ks[2], (dim, dim)),
        "proj_b": jnp.zeros((dim,), jnp.float32),
    }
    if sr_ratio > 1:
        fan_out = sr_ratio * sr_ratio * dim
        p["sr_w"] = (jax.random.normal(ks[3], (dim, dim, sr_ratio, sr_ratio), jnp.float32)
                     * math.sqrt(2.0 / fan_out))
        p["sr_b"] = jnp.zeros((dim,), jnp.float32)
        p["ln_g"] = jnp.ones((dim,), jnp.float32)
        p["ln_b"] = jnp.zeros((dim,), jnp.float32)
    return p


# ------------------------------- forward ----------------------------------

def attention_forward(params, x, H, W, num_heads, sr_ratio, qk_scale=None):
    B, N, C = x.shape
    assert N == H * W and C % num_heads == 0
    hd = C // num_heads
    # NOTE: like the PyTorch module, qk_scale=0.0 is treated as "unset".
    scale = qk_scale or hd ** (-0.5)

    # q = self.q(x): kept in (B, N, C) layout; heads are column windows, so no
    # (B, heads, N, hd) transpose is ever materialized.
    q = linear(x.reshape(B * N, C), params["q_w"].T, params["q_b"]).reshape(B, N, C)

    if sr_ratio > 1:
        # sr conv has kernel_size == stride: a non-overlapping patch projection.
        # Rearrange to (B*Nkv, sr*sr*C) patch rows (C stays the lane dim) and
        # run conv + LayerNorm as one fused Pallas matmul.
        Hs, Ws = H // sr_ratio, W // sr_ratio
        patches = x.reshape(B, Hs, sr_ratio, Ws, sr_ratio, C)
        patches = patches.transpose(0, 1, 3, 2, 4, 5)             # (B,Hs,Ws,sr,sr,C)
        patches = patches.reshape(B * Hs * Ws, sr_ratio * sr_ratio * C)
        # conv weight (O, I, kh, kw) -> (kh*kw*I, O) to match the patch layout.
        w_sr = params["sr_w"].transpose(2, 3, 1, 0).reshape(
            sr_ratio * sr_ratio * C, C)
        x_red = linear_layernorm(patches, w_sr, params["sr_b"],
                                 params["ln_g"], params["ln_b"])   # (B*Nkv, C)
        Nkv = Hs * Ws
    else:
        x_red = x.reshape(B * N, C)
        Nkv = N

    # kv = self.kv(x_): (B, Nkv, 2C); k/v + head split happen inside the kernel.
    kv = linear(x_red, params["kv_w"].T, params["kv_b"]).reshape(B, Nkv, 2 * C)

    o = attention_core(q, kv, num_heads, scale)                    # (B, N, C)
    out = linear(o.reshape(B * N, C), params["proj_w"].T, params["proj_b"])
    return out.reshape(B, N, C)


# --------------------------- pure-JAX reference ----------------------------

def attention_reference(params, x, H, W, num_heads, sr_ratio, qk_scale=None):
    B, N, C = x.shape
    hd = C // num_heads
    scale = qk_scale or hd ** (-0.5)
    q = (x @ params["q_w"].T + params["q_b"]).reshape(B, N, num_heads, hd).transpose(0, 2, 1, 3)
    if sr_ratio > 1:
        x_ = x.transpose(0, 2, 1).reshape(B, C, H, W)
        x_ = jax.lax.conv_general_dilated(
            x_, params["sr_w"], window_strides=(sr_ratio, sr_ratio), padding="VALID",
            dimension_numbers=("NCHW", "OIHW", "NCHW")) + params["sr_b"][None, :, None, None]
        x_ = x_.reshape(B, C, -1).transpose(0, 2, 1)
        mu = x_.mean(-1, keepdims=True)
        var = ((x_ - mu) ** 2).mean(-1, keepdims=True)
        x_ = (x_ - mu) / jnp.sqrt(var + 1e-5) * params["ln_g"] + params["ln_b"]
    else:
        x_ = x
    kv = (x_ @ params["kv_w"].T + params["kv_b"])
    kv = kv.reshape(B, -1, 2, num_heads, hd).transpose(2, 0, 3, 1, 4)
    k, v = kv[0], kv[1]
    attn = jax.nn.softmax(q @ k.transpose(0, 1, 3, 2) * scale, axis=-1)
    o = (attn @ v).transpose(0, 2, 1, 3).reshape(B, N, C)
    return o @ params["proj_w"].T + params["proj_b"]


# --------------------------------- main ------------------------------------

if __name__ == "__main__":
    # Small but lane-dense shapes: C = 128 so attention stores use full lanes.
    B, dim, num_heads, H, W, sr_ratio = 2, 128, 8, 8, 8, 2
    N = H * W

    key = jax.random.PRNGKey(0)
    kx, kp = jax.random.split(key)
    x = jax.random.normal(kx, (B, N, dim), jnp.float32)
    params = init_params(kp, dim, sr_ratio)

    out = attention_forward(params, x, H, W, num_heads, sr_ratio)
    out = jax.block_until_ready(out)

    ref = attention_reference(params, x, H, W, num_heads, sr_ratio)
    # Tolerance loosened slightly (vs pure-f32) because the softmax denominator
    # uses the EUP approximate reciprocal (pl.reciprocal(..., approx=True)).
    np.testing.assert_allclose(np.asarray(out), np.asarray(ref),
                               rtol=5e-3, atol=5e-3)

    print("KERNEL_OK")
</pallas_src>

<mosaic_0001>
module attributes {stable_mosaic.version = 11 : i64} {
  func.func @_linear_kernel(%arg0: i32, %arg1: memref<128x128xf32, #tpu.memory_space<vmem>>, %arg2: memref<128x128xf32, #tpu.memory_space<vmem>>, %arg3: memref<1x128xf32, #tpu.memory_space<vmem>>, %arg4: memref<128x128xf32, #tpu.memory_space<vmem>>) attributes {dimension_semantics = [#tpu.dimension_semantics<parallel>], iteration_bounds = array<i64: 1>, scalar_prefetch = 0 : i64, scratch_operands = 0 : i64, tpu.core_type = #tpu.core_type<tc>, window_params = [{transform_indices = @transform_0, window_bounds = array<i64: 128, 128>}, {pipeline_mode = #tpu.pipeline_mode<synchronous>, transform_indices = @transform_1, window_bounds = array<i64: 128, 128>}, {pipeline_mode = #tpu.pipeline_mode<synchronous>, transform_indices = @transform_2, window_bounds = array<i64: 1, 128>}, {transform_indices = @transform_3, window_bounds = array<i64: 128, 128>}]} {
    %c0 = arith.constant 0 : index
    %c0_0 = arith.constant 0 : index
    %0 = vector.load %arg1[%c0, %c0_0] : memref<128x128xf32, #tpu.memory_space<vmem>>, vector<128x128xf32>
    %c0_1 = arith.constant 0 : index
    %c0_2 = arith.constant 0 : index
    %1 = vector.load %arg2[%c0_1, %c0_2] : memref<128x128xf32, #tpu.memory_space<vmem>>, vector<128x128xf32>
    %cst = arith.constant dense<0.000000e+00> : vector<128x128xf32>
    %2 = tpu.matmul %0, %1, %cst {dimension_numbers = #tpu.dot_dimension_numbers<[1], [0], [0], [1], [0, 0, 1, 1], [], []>} : vector<128x128xf32>, vector<128x128xf32>, vector<128x128xf32> -> vector<128x128xf32>
    %c0_3 = arith.constant 0 : index
    %c0_4 = arith.constant 0 : index
    %3 = vector.load %arg3[%c0_3, %c0_4] : memref<1x128xf32, #tpu.memory_space<vmem>>, vector<1x128xf32>
    %4 = vector.broadcast %3 : vector<1x128xf32> to vector<128x128xf32>
    %5 = arith.addf %2, %4 : vector<128x128xf32>
    %c0_5 = arith.constant 0 : index
    %c0_6 = arith.constant 0 : index
    %6 = vector.load %arg4[%c0_5, %c0_6] : memref<128x128xf32, #tpu.memory_space<vmem>>, vector<128x128xf32>
    tpu.vector_store %arg4[%c0_5, %c0_6], %5 {strides = array<i32>} : memref<128x128xf32, #tpu.memory_space<vmem>>, vector<128x128xf32>,
    return
  }
  func.func @transform_0(%arg0: i32) -> (i32, i32) {
    %c0_i32 = arith.constant 0 : i32
    %c0_i32_0 = arith.constant 0 : i32
    return %arg0, %c0_i32 : i32, i32
  }
  func.func @transform_1(%arg0: i32) -> (i32, i32) {
    %c0_i32 = arith.constant 0 : i32
    %c0_i32_0 = arith.constant 0 : i32
    %c0_i32_1 = arith.constant 0 : i32
    return %c0_i32, %c0_i32_0 : i32, i32
  }
  func.func @transform_2(%arg0: i32) -> (i32, i32) {
    %c0_i32 = arith.constant 0 : i32
    %c0_i32_0 = arith.constant 0 : i32
    %c0_i32_1 = arith.constant 0 : i32
    return %c0_i32, %c0_i32_0 : i32, i32
  }
  func.func @transform_3(%arg0: i32) -> (i32, i32) {
    %c0_i32 = arith.constant 0 : i32
    %c0_i32_0 = arith.constant 0 : i32
    return %arg0, %c0_i32 : i32, i32
  }
}

</mosaic_0001>

<llo_original>
// kernel: tpu_custom_call.1
$region0: #{tpu_custom_call.1}
  #allocation0 [shape = 'u32[]', space=smem, size = 0x4, offset = 0x4, fixed_abs, tag = 'smem constant byte address 0x4 - core index']
  #allocation1 [shape = 'u32[144,128]{1,0:T(1,128)}', space=vmem, size = 0x12000, scoped, tag = 'internal scratch']
  %s0 = inlined_call_operand.hbm [shape: f32[128,128], index: 0, kind: input, shape index: {}]
  %s1 = inlined_call_operand.hbm [shape: f32[128,128], index: 1, kind: input, shape index: {}]
  %s2 = inlined_call_operand.vmem [shape: f32[1,128], index: 2, kind: input, shape index: {}]
  %s3 = inlined_call_operand.hbm [shape: f32[128,128], index: 3, kind: output, shape index: {}]
  %s4 = sld [smem:[#allocation0]]
  $region30: #{tpu_custom_call.1} parent=0
    _
  %s6 = ssub.s32 1, %s4
  %s7 = scalar_select 0, %s6, %s4
  $region1: #{tpu_custom_call.1} parent=0
    #allocation2 [shape = 'u8[65536]{0}', space=vmem, size = 0x10000, scoped, tag = 'input window, operand 0, single buffered']
    #allocation3 [shape = 's32[1]{0}', space=sflag, size = 0x4, scoped, tag = 'scoped memory for tpu_custom_call.1']
    #allocation4 [shape = 's32[1]{0}', space=sflag, size = 0x4, scoped, tag = 'scoped memory for tpu_custom_call.1']
    #allocation5 [shape = 'u8[65536]{0}', space=vmem, size = 0x10000, scoped, tag = 'input window, operand 1, single buffered']
    #allocation6 [shape = 's32[1]{0}', space=sflag, size = 0x4, scoped, tag = 'scoped memory for tpu_custom_call.1']
    #allocation7 [shape = 'u8[65536]{0}', space=vmem, size = 0x10000, scoped, tag = 'output window, operand 0, single buffered']
    %8 = vsyncpa [#allocation3], 0
    %9 = vsyncpa [#allocation6], 0
    %10 = vsyncpa [#allocation4], 0
    // Predicated region
    $region2: #{tpu_custom_call.1} parent=1 // pred_check
      _
    $region3: #{tpu_custom_call.1} parent=1 // pred_check_branch
      %12 = sbr.rel (0) target = $region5
    $region4: #{tpu_custom_call.1} parent=1 // pred_region
      %s14 = ssub.s32 2048, 2048
      %15 = vsyncadd [#allocation3], %s14
      %s16 = sshll.u32 [#allocation2], 4
      %s17 = int_to_ptr.vmem [resolvable:$true] %s16
      %22 = dma.hbm_to_vmem [thread:$0]  %s0, 2048, %s17, [#allocation3], 128, 128, 8
    $region5: #{tpu_custom_call.1} parent=1 // pred_fallthru
      _
    // Predicated region
    $region6: #{tpu_custom_call.1} parent=1 // pred_check
      _
    $region7: #{tpu_custom_call.1} parent=1 // pred_check_branch
      %24 = sbr.rel (0) target = $region9
    $region8: #{tpu_custom_call.1} parent=1 // pred_region
      %s26 = ssub.s32 2048, 2048
      %27 = vsyncadd [#allocation6], %s26
      %s28 = sshll.u32 [#allocation5], 4
      %s29 = int_to_ptr.vmem [resolvable:$true] %s28
      %34 = dma.hbm_to_vmem [thread:$0]  %s1, 2048, %s29, [#allocation6], 128, 128, 8
    $region9: #{tpu_custom_call.1} parent=1 // pred_fallthru
      _
    // Predicated region
    $region10: #{tpu_custom_call.1} parent=1 // pred_check
      _
    $region11: #{tpu_custom_call.1} parent=1 // pred_check_branch
      %36 = sbr.rel (0) target = $region13
    $region12: #{tpu_custom_call.1} parent=1 // pred_region
      _
    $region13: #{tpu_custom_call.1} parent=1 // pred_fallthru
      _
    // Predicated region
    $region14: #{tpu_custom_call.1} parent=1 // pred_check
      _
    $region15: #{tpu_custom_call.1} parent=1 // pred_check_branch
      %38 = sbr.rel (0) target = $region17
    $region16: #{tpu_custom_call.1} parent=1 // pred_region
      %39 = dma.done [#allocation3], 2048
    $region17: #{tpu_custom_call.1} parent=1 // pred_fallthru
      _
    // Predicated region
    $region18: #{tpu_custom_call.1} parent=1 // pred_check
      _
    $region19: #{tpu_custom_call.1} parent=1 // pred_check_branch
      %41 = sbr.rel (0) target = $region21
    $region20: #{tpu_custom_call.1} parent=1 // pred_region
      %42 = dma.done [#allocation6], 2048
    $region21: #{tpu_custom_call.1} parent=1 // pred_fallthru
      _
    %v43 = vld [vmem:[#allocation2] sm:$0xff]
    %v44 = vld [vmem:[#allocation2 + $0x8] sm:$0xff]
    %v45 = vld [vmem:[#allocation2 + $0x10] sm:$0xff]
    %v46 = vld [vmem:[#allocation2 + $0x18] sm:$0xff]
    %v47 = vld [vmem:[#allocation2 + $0x20] sm:$0xff]
    %v48 = vld [vmem:[#allocation2 + $0x28] sm:$0xff]
    %v49 = vld [vmem:[#allocation2 + $0x30] sm:$0xff]
    %v50 = vld [vmem:[#allocation2 + $0x38] sm:$0xff]
    %v51 = vld [vmem:[#allocation2 + $0x40] sm:$0xff]
    %v52 = vld [vmem:[#allocation2 + $0x48] sm:$0xff]
    %v53 = vld [vmem:[#allocation2 + $0x50] sm:$0xff]
    %v54 = vld [vmem:[#allocation2 + $0x58] sm:$0xff]
    %v55 = vld [vmem:[#allocation2 + $0x60] sm:$0xff]
    %v56 = vld [vmem:[#allocation2 + $0x68] sm:$0xff]
    %v57 = vld [vmem:[#allocation2 + $0x70] sm:$0xff]
    %v58 = vld [vmem:[#allocation2 + $0x78] sm:$0xff]
    %v59 = vld [vmem:[#allocation5] sm:$0xff]
    %v60 = vld [vmem:[#allocation5 + $0x8] sm:$0xff]
    %v61 = vld [vmem:[#allocation5 + $0x10] sm:$0xff]
    %v62 = vld [vmem:[#allocation5 + $0x18] sm:$0xff]
    %v63 = vld [vmem:[#allocation5 + $0x20] sm:$0xff]
    %v64 = vld [vmem:[#allocation5 + $0x28] sm:$0xff]
    %v65 = vld [vmem:[#allocation5 + $0x30] sm:$0xff]
    %v66 = vld [vmem:[#allocation5 + $0x38] sm:$0xff]
    %v67 = vld [vmem:[#allocation5 + $0x40] sm:$0xff]
    %v68 = vld [vmem:[#allocation5 + $0x48] sm:$0xff]
    %v69 = vld [vmem:[#allocation5 + $0x50] sm:$0xff]
    %v70 = vld [vmem:[#allocation5 + $0x58] sm:$0xff]
    %v71 = vld [vmem:[#allocation5 + $0x60] sm:$0xff]
    %v72 = vld [vmem:[#allocation5 + $0x68] sm:$0xff]
    %v73 = vld [vmem:[#allocation5 + $0x70] sm:$0xff]
    %v74 = vld [vmem:[#allocation5 + $0x78] sm:$0xff]
    %v75 = vld [vmem:[%s2] sm:$0x1]
    %v77 = vlaneseq
    %v78 = vshrl.u32 %v77, 7
    %v79 = vsub.s32 0, %v78
    %v80 = vrot.slane %v75, %v79
    %82 = vmatprep.subr.mxu0 0.0
    %83 = vmatpush1.msra.mxu0 %v59
    %84 = vmatprep.subr.mxu0 0.0
    %85 = vmatpush1.msra.mxu0 %v60
    %86 = vmatprep.subr.mxu0 0.0
    %87 = vmatpush1.msra.mxu0 %v61
    %88 = vmatprep.subr.mxu0 0.0
    %89 = vmatpush1.msra.mxu0 %v62
    %90 = vmatprep.subr.mxu0 0.0
    %91 = vmatpush1.msra.mxu0 %v63
    %92 = vmatprep.subr.mxu0 0.0
    %93 = vmatpush1.msra.mxu0 %v64
    %94 = vmatprep.subr.mxu0 0.0
    %95 = vmatpush1.msra.mxu0 %v65
    %96 = vmatprep.subr.mxu0 0.0
    %97 = vmatpush1.msra.mxu0 %v66
    %98 = vmatprep.subr.mxu0 0.0
    %99 = vmatpush1.msra.mxu0 %v67
    %100 = vmatprep.subr.mxu0 0.0
    %101 = vmatpush1.msra.mxu0 %v68
    %102 = vmatprep.subr.mxu0 0.0
    %103 = vmatpush1.msra.mxu0 %v69
    %104 = vmatprep.subr.mxu0 0.0
    %105 = vmatpush1.msra.mxu0 %v70
    %106 = vmatprep.subr.mxu0 0.0
    %107 = vmatpush1.msra.mxu0 %v71
    %108 = vmatprep.subr.mxu0 0.0
    %109 = vmatpush1.msra.mxu0 %v72
    %110 = vmatprep.subr.mxu0 0.0
    %111 = vmatpush1.msra.mxu0 %v73
    %112 = vmatprep.subr.mxu0 0.0
    %113 = vmatpush1.msra.mxu0 %v74
    %114 = vmatprep.subr.mxu0 0.0
    %115 = vmatpush1.msra.mxu0 0.0
    %116 = vmatprep.subr.mxu0 0.0
    %117 = vmatpush1.msra.mxu0 0.0
    %118 = vmatprep.subr.mxu0 0.0
    %119 = vmatpush1.msra.mxu0 0.0
    %120 = vmatprep.subr.mxu0 0.0
    %121 = vmatpush1.msra.mxu0 0.0
    %122 = vmatprep.subr.mxu0 0.0
    %123 = vmatpush1.msra.mxu0 0.0
    %124 = vmatprep.subr.mxu0 0.0
    %125 = vmatpush1.msra.mxu0 0.0
    %126 = vmatprep.subr.mxu0 0.0
    %127 = vmatpush1.msra.mxu0 0.0
    %128 = vmatprep.subr.mxu0 0.0
    %129 = vmatpush1.msra.mxu0 0.0
    %130 = vmatprep.subr.mxu0 0.0
    %131 = vmatpush1.msra.mxu0 0.0
    %132 = vmatprep.subr.mxu0 0.0
    %133 = vmatpush1.msra.mxu0 0.0
    %134 = vmatprep.subr.mxu0 0.0
    %135 = vmatpush1.msra.mxu0 0.0
    %136 = vmatprep.subr.mxu0 0.0
    %137 = vmatpush1.msra.mxu0 0.0
    %138 = vmatprep.subr.mxu0 0.0
    %139 = vmatpush1.msra.mxu0 0.0
    %140 = vmatprep.subr.mxu0 0.0
    %141 = vmatpush1.msra.mxu0 0.0
    %142 = vmatprep.subr.mxu0 0.0
    %143 = vmatpush1.msra.mxu0 0.0
    %144 = vmatprep.subr.mxu0 0.0
    %145 = vmatpush1.msra.mxu0 0.0
    %146 = vmatprep.mubr.f32.mxu0 0.0
    %147 = vmatmul.mubr.f32.gmra.mrb[0].mxu0 %v43
    %v148 = vpop.f32.mrb[0].mxu0
    %v149 = vadd.f32 %v80, %v148
    %v150 = vpop.f32.mrb[0].mxu0
    %151 = vmatprep.mubr.f32.mxu0 0.0
    %152 = vmatmul.mubr.f32.gmra.mrb[0].mxu0 %v44
    %v153 = vpop.f32.mrb[0].mxu0
    %v154 = vadd.f32 %v80, %v153
    %v155 = vpop.f32.mrb[0].mxu0
    %156 = vmatprep.mubr.f32.mxu0 0.0
    %157 = vmatmul.mubr.f32.gmra.mrb[0].mxu0 %v45
    %v158 = vpop.f32.mrb[0].mxu0
    %v159 = vadd.f32 %v80, %v158
    %v160 = vpop.f32.mrb[0].mxu0
    %161 = vmatprep.mubr.f32.mxu0 0.0
    %162 = vmatmul.mubr.f32.gmra.mrb[0].mxu0 %v46
    %v163 = vpop.f32.mrb[0].mxu0
    %v164 = vadd.f32 %v80, %v163
    %v165 = vpop.f32.mrb[0].mxu0
    %166 = vmatprep.mubr.f32.mxu0 0.0
    %167 = vmatmul.mubr.f32.gmra.mrb[0].mxu0 %v47
    %v168 = vpop.f32.mrb[0].mxu0
    %v169 = vadd.f32 %v80, %v168
    %v170 = vpop.f32.mrb[0].mxu0
    %171 = vmatprep.mubr.f32.mxu0 0.0
    %172 = vmatmul.mubr.f32.gmra.mrb[0].mxu0 %v48
    %v173 = vpop.f32.mrb[0].mxu0
    %v174 = vadd.f32 %v80, %v173
    %v175 = vpop.f32.mrb[0].mxu0
    %176 = vmatprep.mubr.f32.mxu0 0.0
    %177 = vmatmul.mubr.f32.gmra.mrb[0].mxu0 %v49
    %v178 = vpop.f32.mrb[0].mxu0
    %v179 = vadd.f32 %v80, %v178
    %v180 = vpop.f32.mrb[0].mxu0
    %181 = vmatprep.mubr.f32.mxu0 0.0
    %182 = vmatmul.mubr.f32.gmra.mrb[0].mxu0 %v50
    %v183 = vpop.f32.mrb[0].mxu0
    %v184 = vadd.f32 %v80, %v183
    %v185 = vpop.f32.mrb[0].mxu0
    %186 = vmatprep.mubr.f32.mxu0 0.0
    %187 = vmatmul.mubr.f32.gmra.mrb[0].mxu0 %v51
    %v188 = vpop.f32.mrb[0].mxu0
    %v189 = vadd.f32 %v80, %v188
    %v190 = vpop.f32.mrb[0].mxu0
    %191 = vmatprep.mubr.f32.mxu0 0.0
    %192 = vmatmul.mubr.f32.gmra.mrb[0].mxu0 %v52
    %v193 = vpop.f32.mrb[0].mxu0
    %v194 = vadd.f32 %v80, %v193
    %v195 = vpop.f32.mrb[0].mxu0
    %196 = vmatprep.mubr.f32.mxu0 0.0
    %197 = vmatmul.mubr.f32.gmra.mrb[0].mxu0 %v53
    %v198 = vpop.f32.mrb[0].mxu0
    %v199 = vadd.f32 %v80, %v198
    %v200 = vpop.f32.mrb[0].mxu0
    %201 = vmatprep.mubr.f32.mxu0 0.0
    %202 = vmatmul.mubr.f32.gmra.mrb[0].mxu0 %v54
    %v203 = vpop.f32.mrb[0].mxu0
    %v204 = vadd.f32 %v80, %v203
    %v205 = vpop.f32.mrb[0].mxu0
    %206 = vmatprep.mubr.f32.mxu0 0.0
    %207 = vmatmul.mubr.f32.gmra.mrb[0].mxu0 %v55
    %v208 = vpop.f32.mrb[0].mxu0
    %v209 = vadd.f32 %v80, %v208
    %v210 = vpop.f32.mrb[0].mxu0
    %211 = vmatprep.mubr.f32.mxu0 0.0
    %212 = vmatmul.mubr.f32.gmra.mrb[0].mxu0 %v56
    %v213 = vpop.f32.mrb[0].mxu0
    %v214 = vadd.f32 %v80, %v213
    %v215 = vpop.f32.mrb[0].mxu0
    %216 = vmatprep.mubr.f32.mxu0 0.0
    %217 = vmatmul.mubr.f32.gmra.mrb[0].mxu0 %v57
    %v218 = vpop.f32.mrb[0].mxu0
    %v219 = vadd.f32 %v80, %v218
    %v220 = vpop.f32.mrb[0].mxu0
    %221 = vmatprep.mubr.f32.mxu0 0.0
    %222 = vmatmul.mubr.f32.gmra.mrb[0].mxu0 %v58
    %v223 = vpop.f32.mrb[0].mxu0
    %v224 = vadd.f32 %v80, %v223
    %v225 = vpop.f32.mrb[0].mxu0
    %226 = vdwg.mxu0
    %227 = vst [vmem:[#allocation7] sm:$0xff] %v149
    %228 = vst [vmem:[#allocation7 + $0x8] sm:$0xff] %v154
    %229 = vst [vmem:[#allocation7 + $0x10] sm:$0xff] %v159
    %230 = vst [vmem:[#allocation7 + $0x18] sm:$0xff] %v164
    %231 = vst [vmem:[#allocation7 + $0x20] sm:$0xff] %v169
    %232 = vst [vmem:[#allocation7 + $0x28] sm:$0xff] %v174
    %233 = vst [vmem:[#allocation7 + $0x30] sm:$0xff] %v179
    %234 = vst [vmem:[#allocation7 + $0x38] sm:$0xff] %v184
    %235 = vst [vmem:[#allocation7 + $0x40] sm:$0xff] %v189
    %236 = vst [vmem:[#allocation7 + $0x48] sm:$0xff] %v194
    %237 = vst [vmem:[#allocation7 + $0x50] sm:$0xff] %v199
    %238 = vst [vmem:[#allocation7 + $0x58] sm:$0xff] %v204
    %239 = vst [vmem:[#allocation7 + $0x60] sm:$0xff] %v209
    %240 = vst [vmem:[#allocation7 + $0x68] sm:$0xff] %v214
    %241 = vst [vmem:[#allocation7 + $0x70] sm:$0xff] %v219
    %242 = vst [vmem:[#allocation7 + $0x78] sm:$0xff] %v224
    // Predicated region
    $region22: #{tpu_custom_call.1} parent=1 // pred_check
      _
    $region23: #{tpu_custom_call.1} parent=1 // pred_check_branch
      %244 = sbr.rel (0) target = $region25
    $region24: #{tpu_custom_call.1} parent=1 // pred_region
      %s246 = ssub.s32 2048, 2048
      %247 = vsyncadd [#allocation4], %s246
      %s248 = sshll.u32 [#allocation7], 4
      %s249 = int_to_ptr.vmem [resolvable:$true] %s248
      %254 = dma.vmem_to_hbm [thread:$0]  %s249, 2048, %s3, [#allocation4], 128, 128, 8
    $region25: #{tpu_custom_call.1} parent=1 // pred_fallthru
      _
    // Predicated region
    $region26: #{tpu_custom_call.1} parent=1 // pred_check
      _
    $region27: #{tpu_custom_call.1} parent=1 // pred_check_branch
      %256 = sbr.rel (0) target = $region29
    $region28: #{tpu_custom_call.1} parent=1 // pred_region
      %257 = dma.done [#allocation4], 2048
    $region29: #{tpu_custom_call.1} parent=1 // pred_fallthru
      _
    %258 = vsyncpa [#allocation3], 1
    %259 = vsyncpa [#allocation6], 1
    %260 = vsyncpa [#allocation4], 1

</llo_original>
